<compile_context>
chip_gen: v7x
topology: tpu7x:2x2x1
jax: 0.10.0
libtpu: 0.0.40
codegen_flags: <defaults>
</compile_context>

<pallas_src>
import jax
import jax.numpy as jnp
from jax.experimental import pallas as pl
from jax.experimental.pallas import tpu as pltpu


_LANES = 128
_PAD = -1e30  # exp(_PAD - reasonable_theta) flushes to 0 in f32, stays finite.


def _partial_nll_kernel(theta_ref, obs_ref, m_ref, s_ref, to_ref, no_ref):
    """One (block_rows, 128) tile of the streaming reduction.

    theta_ref: (block_rows, 128) f32    risk scores
    obs_ref:   (block_rows, 128) int8   observed indicator (1 - censored)
    m_ref/s_ref/to_ref/no_ref: (1, 1, 128) f32 per-lane resident accumulators
        m  : running per-lane max of theta           (online logsumexp)
        s  : running per-lane sum of exp(theta - m)  (online logsumexp)
        to : running per-lane sum of theta * observed
        no : running per-lane sum of observed
    """
    k = pl.program_id(1)

    @pl.when(k == 0)
    def _init():
        m_ref[0] = jnp.full((1, _LANES), _PAD, dtype=jnp.float32)
        s_ref[0] = jnp.zeros((1, _LANES), dtype=jnp.float32)
        to_ref[0] = jnp.zeros((1, _LANES), dtype=jnp.float32)
        no_ref[0] = jnp.zeros((1, _LANES), dtype=jnp.float32)

    theta = theta_ref[...]                          # (block_rows, 128) f32
    obs = obs_ref[...].astype(jnp.float32)          # (block_rows, 128) f32

    # ---- per-lane online logsumexp (numerically stable) -----------------
    tile_max = jnp.max(theta, axis=0, keepdims=True)            # (1, 128)
    m_old = m_ref[0]                                             # (1, 128)
    m_new = jnp.maximum(m_old, tile_max)
    tile_s = jnp.sum(jnp.exp(theta - m_new), axis=0, keepdims=True)
    s_ref[0] = s_ref[0] * jnp.exp(m_old - m_new) + tile_s
    m_ref[0] = m_new

    # ---- per-lane partial sums for numerator / normalizer ---------------
    to_ref[0] = to_ref[0] + jnp.sum(theta * obs, axis=0, keepdims=True)
    no_ref[0] = no_ref[0] + jnp.sum(obs, axis=0, keepdims=True)


def _partial_nll_small(theta_flat, cens_flat):
    """Pure-JAX path for tiny cohorts (kernel overhead not worth it)."""
    observed = 1.0 - cens_flat
    m = jnp.max(theta_flat)
    log_z = m + jnp.log(jnp.sum(jnp.exp(theta_flat - m)))
    return -(jnp.sum((theta_flat - log_z) * observed) / jnp.sum(observed))


def partial_nll(theta, R, censored, *, block_rows=512, num_splits=2,
                min_pallas_n=4096):
    """Pallas implementation of PartialNLL.forward(theta, R, censored).

    theta:    (N, 1) or (N,) risk scores
    R:        (N, N) risk-set matrix (unused, kept for signature parity)
    censored: (N,)   censoring indicator (1 = censored, 0 = observed)
    Returns a scalar loss (float32).

    block_rows:   rows (x128 lanes) per streamed tile; multiple of 32.
    num_splits:   leading "parallel" grid axis (2 shards across both TCs on v7x).
    min_pallas_n: below this N the pure-JAX fallback is used.
    """
    del R  # unused by the reference forward pass
    theta_flat = jnp.reshape(theta, (-1,)).astype(jnp.float32)
    cens_flat = jnp.reshape(censored, (-1,)).astype(jnp.float32)
    n = theta_flat.shape[0]

    if n < min_pallas_n:
        return _partial_nll_small(theta_flat, cens_flat)

    assert block_rows % 32 == 0, "block_rows must be a multiple of 32"

    # Observed indicator streamed as 1 byte/element.
    obs_i8 = (1.0 - cens_flat).astype(jnp.int8)

    rows = -(-n // _LANES)
    tiles_total = -(-rows // block_rows)
    num_splits = max(1, min(num_splits, tiles_total))
    tiles_per_split = -(-tiles_total // num_splits)
    rows_padded = num_splits * tiles_per_split * block_rows
    pad = rows_padded * _LANES - n
    n_padded = rows_padded * _LANES

    theta2d = jnp.pad(theta_flat, (0, pad), constant_values=_PAD
                      ).reshape(rows_padded, _LANES)
    obs2d = jnp.pad(obs_i8, (0, pad), constant_values=0
                    ).reshape(rows_padded, _LANES)

    acc_shape = jax.ShapeDtypeStruct((num_splits, 1, _LANES), jnp.float32)
    acc_spec = pl.BlockSpec((1, 1, _LANES), lambda c, k: (c, 0, 0))
    in_map = lambda c, k: (c * tiles_per_split + k, 0)

    m_p, s_p, to_p, no_p = pl.pallas_call(
        _partial_nll_kernel,
        out_shape=(acc_shape,) * 4,
        grid=(num_splits, tiles_per_split),
        in_specs=[
            pl.BlockSpec((block_rows, _LANES), in_map),   # theta f32
            pl.BlockSpec((block_rows, _LANES), in_map),   # observed int8
        ],
        out_specs=(acc_spec,) * 4,
        compiler_params=pltpu.CompilerParams(
            dimension_semantics=("parallel", "arbitrary"),
        ),
        cost_estimate=pl.CostEstimate(
            flops=6 * n_padded,
            transcendentals=n_padded,
            bytes_accessed=5 * n_padded + 4 * num_splits * _LANES * 4,
        ),
    )(theta2d, obs2d)

    # Tiny epilogue on num_splits x 128 partials (plain JAX, negligible).
    m = m_p[:, 0, :]
    s = s_p[:, 0, :]
    m_glob = jnp.max(m)
    sum_exp = jnp.sum(s * jnp.exp(m - m_glob))   # padded lanes contribute 0
    log_z = m_glob + jnp.log(sum_exp)
    sum_theta_obs = jnp.sum(to_p)
    num_observed = jnp.sum(no_p)
    # NOTE: num_observed == 0 (all censored) yields NaN, matching the reference.
    return -(sum_theta_obs - log_z * num_observed) / num_observed


def _reference(theta, censored):
    # Pure-JAX reference mirroring the PyTorch math (in f32).
    theta_f = jnp.reshape(theta, (-1,)).astype(jnp.float32)
    cens_f = jnp.reshape(censored, (-1,)).astype(jnp.float32)
    observed = 1.0 - cens_f
    log_sum = jnp.log(jnp.sum(jnp.exp(theta_f)))
    return -(jnp.sum((theta_f - log_sum) * observed) / jnp.sum(observed))


if __name__ == "__main__":
    key = jax.random.PRNGKey(0)
    k1, k2, k3, k4, k5 = jax.random.split(key, 5)

    # --- Case 1: tiny cohort (N=8), kernel path forced --------------------
    N1 = 8
    theta1 = jax.random.normal(k1, (N1, 1), dtype=jnp.float32)
    cens1 = jax.random.bernoulli(k2, 0.5, (N1,)).astype(jnp.float32)
    cens1 = cens1.at[0].set(0.0)  # ensure at least one observed event
    R1 = (jax.random.uniform(k3, (N1, N1)) > 0.5).astype(jnp.float32)  # unused

    loss1 = jax.block_until_ready(
        partial_nll(theta1, R1, cens1, min_pallas_n=0))
    ref1 = _reference(theta1, cens1)
    assert jnp.isfinite(loss1), "loss1 is not finite"
    assert jnp.allclose(loss1, ref1, rtol=1e-5, atol=1e-5), (loss1, ref1)

    # --- Case 2: multi-tile + 2-way core split + ragged padding -----------
    N2 = 9000
    theta2 = jax.random.normal(k4, (N2, 1), dtype=jnp.float32)
    cens2 = jax.random.bernoulli(k5, 0.5, (N2,)).astype(jnp.float32)
    cens2 = cens2.at[0].set(0.0)
    R2 = jnp.zeros((1, 1), dtype=jnp.float32)  # unused, keep tiny

    loss2 = jax.block_until_ready(
        partial_nll(theta2, R2, cens2, block_rows=32, num_splits=2,
                    min_pallas_n=0))
    ref2 = _reference(theta2, cens2)
    assert jnp.isfinite(loss2), "loss2 is not finite"
    assert jnp.allclose(loss2, ref2, rtol=1e-4, atol=1e-4), (loss2, ref2)

    # --- Case 3: default small-N fallback (pure-JAX path) -----------------
    loss3 = jax.block_until_ready(partial_nll(theta1, R1, cens1))
    assert jnp.allclose(loss3, ref1, rtol=1e-5, atol=1e-5), (loss3, ref1)

    print("KERNEL_OK")
</pallas_src>

<mosaic_0001>
module attributes {stable_mosaic.version = 11 : i64} {
  func.func @_partial_nll_kernel(%arg0: i32, %arg1: i32, %arg2: memref<512x128xf32, #tpu.memory_space<vmem>>, %arg3: memref<512x128xi8, #tpu.memory_space<vmem>>, %arg4: memref<1x1x128xf32, #tpu.memory_space<vmem>>, %arg5: memref<1x1x128xf32, #tpu.memory_space<vmem>>, %arg6: memref<1x1x128xf32, #tpu.memory_space<vmem>>, %arg7: memref<1x1x128xf32, #tpu.memory_space<vmem>>) attributes {dimension_semantics = [#tpu.dimension_semantics<parallel>, #tpu.dimension_semantics<arbitrary>], iteration_bounds = array<i64: 1, 1>, scalar_prefetch = 0 : i64, scratch_operands = 0 : i64, tpu.core_type = #tpu.core_type<tc>, window_params = [{transform_indices = @transform_0, window_bounds = array<i64: 512, 128>}, {transform_indices = @transform_1, window_bounds = array<i64: 512, 128>}, {transform_indices = @transform_2, window_bounds = array<i64: 1, 1, 128>}, {transform_indices = @transform_3, window_bounds = array<i64: 1, 1, 128>}, {transform_indices = @transform_4, window_bounds = array<i64: 1, 1, 128>}, {transform_indices = @transform_5, window_bounds = array<i64: 1, 1, 128>}]} {
    %c0_i32 = arith.constant 0 : i32
    %0 = arith.cmpi eq, %arg1, %c0_i32 : i32
    %1 = arith.extui %0 : i1 to i32
    %c0_i32_0 = arith.constant 0 : i32
    %2 = arith.cmpi ne, %1, %c0_i32_0 : i32
    scf.if %2 {
      %cst_31 = arith.constant -1.000000e+30 : f32
      %45 = vector.broadcast %cst_31 : f32 to vector<1x128xf32>
      %c0_32 = arith.constant 0 : index
      %c0_33 = arith.constant 0 : index
      %c0_34 = arith.constant 0 : index
      %46 = vector.load %arg4[%c0_32, %c0_33, %c0_34] : memref<1x1x128xf32, #tpu.memory_space<vmem>>, vector<1x1x128xf32>
      %47 = vector.shape_cast %46 : vector<1x1x128xf32> to vector<1x128xf32>
      %48 = vector.shape_cast %45 : vector<1x128xf32> to vector<1x1x128xf32>
      tpu.vector_store %arg4[%c0_32, %c0_33, %c0_34], %48 {strides = array<i32>} : memref<1x1x128xf32, #tpu.memory_space<vmem>>, vector<1x1x128xf32>,
      %cst_35 = arith.constant 0.000000e+00 : f32
      %49 = vector.broadcast %cst_35 : f32 to vector<1x128xf32>
      %c0_36 = arith.constant 0 : index
      %c0_37 = arith.constant 0 : index
      %c0_38 = arith.constant 0 : index
      %50 = vector.load %arg5[%c0_36, %c0_37, %c0_38] : memref<1x1x128xf32, #tpu.memory_space<vmem>>, vector<1x1x128xf32>
      %51 = vector.shape_cast %50 : vector<1x1x128xf32> to vector<1x128xf32>
      %52 = vector.shape_cast %49 : vector<1x128xf32> to vector<1x1x128xf32>
      tpu.vector_store %arg5[%c0_36, %c0_37, %c0_38], %52 {strides = array<i32>} : memref<1x1x128xf32, #tpu.memory_space<vmem>>, vector<1x1x128xf32>,
      %cst_39 = arith.constant 0.000000e+00 : f32
      %53 = vector.broadcast %cst_39 : f32 to vector<1x128xf32>
      %c0_40 = arith.constant 0 : index
      %c0_41 = arith.constant 0 : index
      %c0_42 = arith.constant 0 : index
      %54 = vector.load %arg6[%c0_40, %c0_41, %c0_42] : memref<1x1x128xf32, #tpu.memory_space<vmem>>, vector<1x1x128xf32>
      %55 = vector.shape_cast %54 : vector<1x1x128xf32> to vector<1x128xf32>
      %56 = vector.shape_cast %53 : vector<1x128xf32> to vector<1x1x128xf32>
      tpu.vector_store %arg6[%c0_40, %c0_41, %c0_42], %56 {strides = array<i32>} : memref<1x1x128xf32, #tpu.memory_space<vmem>>, vector<1x1x128xf32>,
      %cst_43 = arith.constant 0.000000e+00 : f32
      %57 = vector.broadcast %cst_43 : f32 to vector<1x128xf32>
      %c0_44 = arith.constant 0 : index
      %c0_45 = arith.constant 0 : index
      %c0_46 = arith.constant 0 : index
      %58 = vector.load %arg7[%c0_44, %c0_45, %c0_46] : memref<1x1x128xf32, #tpu.memory_space<vmem>>, vector<1x1x128xf32>
      %59 = vector.shape_cast %58 : vector<1x1x128xf32> to vector<1x128xf32>
      %60 = vector.shape_cast %57 : vector<1x128xf32> to vector<1x1x128xf32>
      tpu.vector_store %arg7[%c0_44, %c0_45, %c0_46], %60 {strides = array<i32>} : memref<1x1x128xf32, #tpu.memory_space<vmem>>, vector<1x1x128xf32>,
    } else {
    }
    %c0 = arith.constant 0 : index
    %c0_1 = arith.constant 0 : index
    %3 = vector.load %arg2[%c0, %c0_1] : memref<512x128xf32, #tpu.memory_space<vmem>>, vector<512x128xf32>
    %c0_2 = arith.constant 0 : index
    %c0_3 = arith.constant 0 : index
    %4 = vector.load %arg3[%c0_2, %c0_3] : memref<512x128xi8, #tpu.memory_space<vmem>>, vector<512x128xi8>
    %5 = arith.sitofp %4 : vector<512x128xi8> to vector<512x128xf32>
    %cst = arith.constant dense<0xFF800000> : vector<128xf32>
    %6 = vector.multi_reduction <maximumf>, %3, %cst [0] : vector<512x128xf32> to vector<128xf32>
    %7 = vector.shape_cast %6 : vector<128xf32> to vector<1x128xf32>
    %c0_4 = arith.constant 0 : index
    %c0_5 = arith.constant 0 : index
    %c0_6 = arith.constant 0 : index
    %8 = vector.load %arg4[%c0_4, %c0_5, %c0_6] : memref<1x1x128xf32, #tpu.memory_space<vmem>>, vector<1x1x128xf32>
    %9 = vector.shape_cast %8 : vector<1x1x128xf32> to vector<1x128xf32>
    %10 = arith.maximumf %9, %7 : vector<1x128xf32>
    %11 = vector.broadcast %10 : vector<1x128xf32> to vector<512x128xf32>
    %12 = arith.subf %3, %11 : vector<512x128xf32>
    %13 = math.exp %12 : vector<512x128xf32>
    %cst_7 = arith.constant dense<0.000000e+00> : vector<128xf32>
    %14 = vector.multi_reduction <add>, %13, %cst_7 [0] : vector<512x128xf32> to vector<128xf32>
    %15 = vector.shape_cast %14 : vector<128xf32> to vector<1x128xf32>
    %c0_8 = arith.constant 0 : index
    %c0_9 = arith.constant 0 : index
    %c0_10 = arith.constant 0 : index
    %16 = vector.load %arg5[%c0_8, %c0_9, %c0_10] : memref<1x1x128xf32, #tpu.memory_space<vmem>>, vector<1x1x128xf32>
    %17 = vector.shape_cast %16 : vector<1x1x128xf32> to vector<1x128xf32>
    %18 = arith.subf %9, %10 : vector<1x128xf32>
    %19 = math.exp %18 : vector<1x128xf32>
    %20 = arith.mulf %17, %19 : vector<1x128xf32>
    %21 = arith.addf %20, %15 : vector<1x128xf32>
    %c0_11 = arith.constant 0 : index
    %c0_12 = arith.constant 0 : index
    %c0_13 = arith.constant 0 : index
    %22 = vector.load %arg5[%c0_11, %c0_12, %c0_13] : memref<1x1x128xf32, #tpu.memory_space<vmem>>, vector<1x1x128xf32>
    %23 = vector.shape_cast %22 : vector<1x1x128xf32> to vector<1x128xf32>
    %24 = vector.shape_cast %21 : vector<1x128xf32> to vector<1x1x128xf32>
    tpu.vector_store %arg5[%c0_11, %c0_12, %c0_13], %24 {strides = array<i32>} : memref<1x1x128xf32, #tpu.memory_space<vmem>>, vector<1x1x128xf32>,
    %c0_14 = arith.constant 0 : index
    %c0_15 = arith.constant 0 : index
    %c0_16 = arith.constant 0 : index
    %25 = vector.load %arg4[%c0_14, %c0_15, %c0_16] : memref<1x1x128xf32, #tpu.memory_space<vmem>>, vector<1x1x128xf32>
    %26 = vector.shape_cast %25 : vector<1x1x128xf32> to vector<1x128xf32>
    %27 = vector.shape_cast %10 : vector<1x128xf32> to vector<1x1x128xf32>
    tpu.vector_store %arg4[%c0_14, %c0_15, %c0_16], %27 {strides = array<i32>} : memref<1x1x128xf32, #tpu.memory_space<vmem>>, vector<1x1x128xf32>,
    %c0_17 = arith.constant 0 : index
    %c0_18 = arith.constant 0 : index
    %c0_19 = arith.constant 0 : index
    %28 = vector.load %arg6[%c0_17, %c0_18, %c0_19] : memref<1x1x128xf32, #tpu.memory_space<vmem>>, vector<1x1x128xf32>
    %29 = vector.shape_cast %28 : vector<1x1x128xf32> to vector<1x128xf32>
    %30 = arith.mulf %3, %5 : vector<512x128xf32>
    %cst_20 = arith.constant dense<0.000000e+00> : vector<128xf32>
    %31 = vector.multi_reduction <add>, %30, %cst_20 [0] : vector<512x128xf32> to vector<128xf32>
    %32 = vector.shape_cast %31 : vector<128xf32> to vector<1x128xf32>
    %33 = arith.addf %29, %32 : vector<1x128xf32>
    %c0_21 = arith.constant 0 : index
    %c0_22 = arith.constant 0 : index
    %c0_23 = arith.constant 0 : index
    %34 = vector.load %arg6[%c0_21, %c0_22, %c0_23] : memref<1x1x128xf32, #tpu.memory_space<vmem>>, vector<1x1x128xf32>
    %35 = vector.shape_cast %34 : vector<1x1x128xf32> to vector<1x128xf32>
    %36 = vector.shape_cast %33 : vector<1x128xf32> to vector<1x1x128xf32>
    tpu.vector_store %arg6[%c0_21, %c0_22, %c0_23], %36 {strides = array<i32>} : memref<1x1x128xf32, #tpu.memory_space<vmem>>, vector<1x1x128xf32>,
    %c0_24 = arith.constant 0 : index
    %c0_25 = arith.constant 0 : index
    %c0_26 = arith.constant 0 : index
    %37 = vector.load %arg7[%c0_24, %c0_25, %c0_26] : memref<1x1x128xf32, #tpu.memory_space<vmem>>, vector<1x1x128xf32>
    %38 = vector.shape_cast %37 : vector<1x1x128xf32> to vector<1x128xf32>
    %cst_27 = arith.constant dense<0.000000e+00> : vector<128xf32>
    %39 = vector.multi_reduction <add>, %5, %cst_27 [0] : vector<512x128xf32> to vector<128xf32>
    %40 = vector.shape_cast %39 : vector<128xf32> to vector<1x128xf32>
    %41 = arith.addf %38, %40 : vector<1x128xf32>
    %c0_28 = arith.constant 0 : index
    %c0_29 = arith.constant 0 : index
    %c0_30 = arith.constant 0 : index
    %42 = vector.load %arg7[%c0_28, %c0_29, %c0_30] : memref<1x1x128xf32, #tpu.memory_space<vmem>>, vector<1x1x128xf32>
    %43 = vector.shape_cast %42 : vector<1x1x128xf32> to vector<1x128xf32>
    %44 = vector.shape_cast %41 : vector<1x128xf32> to vector<1x1x128xf32>
    tpu.vector_store %arg7[%c0_28, %c0_29, %c0_30], %44 {strides = array<i32>} : memref<1x1x128xf32, #tpu.memory_space<vmem>>, vector<1x1x128xf32>,
    return
  }
  func.func @transform_0(%arg0: i32, %arg1: i32) -> (i32, i32) {
    %c1_i32 = arith.constant 1 : i32
    %0 = arith.muli %arg0, %c1_i32 : i32
    %1 = arith.addi %0, %arg1 : i32
    %c0_i32 = arith.constant 0 : i32
    %c0_i32_0 = arith.constant 0 : i32
    return %1, %c0_i32 : i32, i32
  }
  func.func @transform_1(%arg0: i32, %arg1: i32) -> (i32, i32) {
    %c1_i32 = arith.constant 1 : i32
    %0 = arith.muli %arg0, %c1_i32 : i32
    %1 = arith.addi %0, %arg1 : i32
    %c0_i32 = arith.constant 0 : i32
    %c0_i32_0 = arith.constant 0 : i32
    return %1, %c0_i32 : i32, i32
  }
  func.func @transform_2(%arg0: i32, %arg1: i32) -> (i32, i32, i32) {
    %c0_i32 = arith.constant 0 : i32
    %c0_i32_0 = arith.constant 0 : i32
    %c0_i32_1 = arith.constant 0 : i32
    return %arg0, %c0_i32, %c0_i32_0 : i32, i32, i32
  }
  func.func @transform_3(%arg0: i32, %arg1: i32) -> (i32, i32, i32) {
    %c0_i32 = arith.constant 0 : i32
    %c0_i32_0 = arith.constant 0 : i32
    %c0_i32_1 = arith.constant 0 : i32
    return %arg0, %c0_i32, %c0_i32_0 : i32, i32, i32
  }
  func.func @transform_4(%arg0: i32, %arg1: i32) -> (i32, i32, i32) {
    %c0_i32 = arith.constant 0 : i32
    %c0_i32_0 = arith.constant 0 : i32
    %c0_i32_1 = arith.constant 0 : i32
    return %arg0, %c0_i32, %c0_i32_0 : i32, i32, i32
  }
  func.func @transform_5(%arg0: i32, %arg1: i32) -> (i32, i32, i32) {
    %c0_i32 = arith.constant 0 : i32
    %c0_i32_0 = arith.constant 0 : i32
    %c0_i32_1 = arith.constant 0 : i32
    return %arg0, %c0_i32, %c0_i32_0 : i32, i32, i32
  }
}

</mosaic_0001>

<llo_original>
// kernel: tpu_custom_call.1
$region0: #{tpu_custom_call.1}
  #allocation0 [shape = 'u32[]', space=smem, size = 0x4, offset = 0x4, fixed_abs, tag = 'smem constant byte address 0x4 - core index']
  #allocation1 [shape = 'u32[144,128]{1,0:T(1,128)}', space=vmem, size = 0x12000, scoped, tag = 'internal scratch']
  %s0 = inlined_call_operand.hbm [shape: f32[512,128], index: 0, kind: input, shape index: {}]
  %s1 = inlined_call_operand.hbm [shape: s8[512,128], index: 1, kind: input, shape index: {}]
  %s2 = inlined_call_operand.hbm [shape: f32[1,1,128], index: 2, kind: output, shape index: {0}]
  %s3 = inlined_call_operand.hbm [shape: f32[1,1,128], index: 3, kind: output, shape index: {1}]
  %s4 = inlined_call_operand.hbm [shape: f32[1,1,128], index: 4, kind: output, shape index: {2}]
  %s5 = inlined_call_operand.hbm [shape: f32[1,1,128], index: 5, kind: output, shape index: {3}]
  %6 = xla_tuple %s2, %s3, %s4, %s5
  %s7 = sld [smem:[#allocation0]]
  $region54: #{tpu_custom_call.1} parent=0
    _
  %s9 = ssub.s32 1, %s7
  %s10 = scalar_select 0, %s9, %s7
  $region1: #{tpu_custom_call.1} parent=0
    #allocation2 [shape = 'u8[262144]{0}', space=vmem, size = 0x40000, scoped, tag = 'input window, operand 0, single buffered']
    #allocation3 [shape = 's32[1]{0}', space=sflag, size = 0x4, scoped, tag = 'scoped memory for tpu_custom_call.1']
    #allocation4 [shape = 's32[1]{0}', space=sflag, size = 0x4, scoped, tag = 'scoped memory for tpu_custom_call.1']
    #allocation5 [shape = 'u8[65536]{0}', space=vmem, size = 0x10000, scoped, tag = 'input window, operand 1, single buffered']
    #allocation6 [shape = 's32[1]{0}', space=sflag, size = 0x4, scoped, tag = 'scoped memory for tpu_custom_call.1']
    #allocation7 [shape = 'u8[512]{0}', space=vmem, size = 0x400, scoped, tag = 'output window, operand 0, single buffered']
    #allocation8 [shape = 'u8[512]{0}', space=vmem, size = 0x400, scoped, tag = 'output window, operand 1, single buffered']
    #allocation9 [shape = 's32[1]{0}', space=sflag, size = 0x4, scoped, tag = 'scoped memory for tpu_custom_call.1']
    #allocation10 [shape = 'u8[512]{0}', space=vmem, size = 0x400, scoped, tag = 'output window, operand 2, single buffered']
    #allocation11 [shape = 'u8[512]{0}', space=vmem, size = 0x400, scoped, tag = 'output window, operand 3, single buffered']
    #allocation12 [shape = 's32[1]{0}', space=sflag, size = 0x4, scoped, tag = 'scoped memory for tpu_custom_call.1']
    %11 = vsyncpa [#allocation3], 0
    %12 = vsyncpa [#allocation6], 0
    %13 = vsyncpa [#allocation4], 0
    %14 = vsyncpa [#allocation9], 0
    %15 = vsyncpa [#allocation12], 0
    // Predicated region
    $region2: #{tpu_custom_call.1} parent=1 // pred_check
      _
    $region3: #{tpu_custom_call.1} parent=1 // pred_check_branch
      %17 = sbr.rel (0) target = $region5
    $region4: #{tpu_custom_call.1} parent=1 // pred_region
      %s18 = sadd.s32 0, 0
      %s19 = smul.u32 64, %s18
      %s21 = ssub.s32 8192, 8192
      %22 = vsyncadd [#allocation3], %s21
      %s23 = smul.addr %s19, 128
      %s24 = scalar_lea.hbm %s0, %s23
      %s25 = sshll.u32 [#allocation2], 4
      %s26 = int_to_ptr.vmem [resolvable:$true] %s25
      %31 = dma.hbm_to_vmem [thread:$0]  %s24, 8192, %s26, [#allocation3], 128, 128, 8
    $region5: #{tpu_custom_call.1} parent=1 // pred_fallthru
      _
    // Predicated region
    $region6: #{tpu_custom_call.1} parent=1 // pred_check
      _
    $region7: #{tpu_custom_call.1} parent=1 // pred_check_branch
      %33 = sbr.rel (0) target = $region9
    $region8: #{tpu_custom_call.1} parent=1 // pred_region
      %s34 = sadd.s32 0, 0
      %s35 = smul.u32 16, %s34
      %s37 = ssub.s32 2048, 2048
      %38 = vsyncadd [#allocation6], %s37
      %s39 = smul.addr %s35, 128
      %s40 = scalar_lea.hbm %s1, %s39
      %s41 = sshll.u32 [#allocation5], 4
      %s42 = int_to_ptr.vmem [resolvable:$true] %s41
      %47 = dma.hbm_to_vmem [thread:$0]  %s40, 2048, %s42, [#allocation6], 128, 128, 8
    $region9: #{tpu_custom_call.1} parent=1 // pred_fallthru
      _
    // Predicated region
    $region10: #{tpu_custom_call.1} parent=1 // pred_check
      _
    $region11: #{tpu_custom_call.1} parent=1 // pred_check_branch
      %49 = sbr.rel (0) target = $region13
    $region12: #{tpu_custom_call.1} parent=1 // pred_region
      %50 = dma.done [#allocation3], 8192
    $region13: #{tpu_custom_call.1} parent=1 // pred_fallthru
      _
    // Predicated region
    $region14: #{tpu_custom_call.1} parent=1 // pred_check
      _
    $region15: #{tpu_custom_call.1} parent=1 // pred_check_branch
      %52 = sbr.rel (0) target = $region17
    $region16: #{tpu_custom_call.1} parent=1 // pred_region
      %53 = dma.done [#allocation6], 2048
    $region17: #{tpu_custom_call.1} parent=1 // pred_fallthru
      _
    %s54 = sadd.s32 0, 0
    %s55 = smul.u32 64, %s54
    %s56 = sadd.s32 0, 0
    %s57 = smul.u32 16, %s56
    %p58 = scmp.eq.s32.totalorder 0, 0
    // Predicated region
    $region18: #{tpu_custom_call.1} parent=1 // pred_check
      %p59 = pneg %p58
    $region19: #{tpu_custom_call.1} parent=1 // pred_check_branch
      %61 = sbr.rel (%p59) target = $region21
    $region20: #{tpu_custom_call.1} parent=1 // pred_region
      %62 = vst [vmem:[#allocation7] sm:$0x1] -1e+30
      %63 = vst [vmem:[#allocation8] sm:$0x1] 0.0
      %64 = vst [vmem:[#allocation10] sm:$0x1] 0.0
      %65 = vst [vmem:[#allocation11] sm:$0x1] 0.0
    $region21: #{tpu_custom_call.1} parent=1 // pred_fallthru
      _
    %v66 = vld [vmem:[#allocation2] sm:$0xff]
    %v67 = vld [vmem:[#allocation2 + $0x8] sm:$0xff]
    %v68 = vld [vmem:[#allocation2 + $0x10] sm:$0xff]
    %v69 = vld [vmem:[#allocation2 + $0x18] sm:$0xff]
    %v70 = vld [vmem:[#allocation2 + $0x20] sm:$0xff]
    %v71 = vld [vmem:[#allocation2 + $0x28] sm:$0xff]
    %v72 = vld [vmem:[#allocation2 + $0x30] sm:$0xff]
    %v73 = vld [vmem:[#allocation2 + $0x38] sm:$0xff]
    %v74 = vld [vmem:[#allocation2 + $0x40] sm:$0xff]
    %v75 = vld [vmem:[#allocation2 + $0x48] sm:$0xff]
    %v76 = vld [vmem:[#allocation2 + $0x50] sm:$0xff]
    %v77 = vld [vmem:[#allocation2 + $0x58] sm:$0xff]
    %v78 = vld [vmem:[#allocation2 + $0x60] sm:$0xff]
    %v79 = vld [vmem:[#allocation2 + $0x68] sm:$0xff]
    %v80 = vld [vmem:[#allocation2 + $0x70] sm:$0xff]
    %v81 = vld [vmem:[#allocation2 + $0x78] sm:$0xff]
    %v82 = vld [vmem:[#allocation2 + $0x80] sm:$0xff]
    %v83 = vld [vmem:[#allocation2 + $0x88] sm:$0xff]
    %v84 = vld [vmem:[#allocation2 + $0x90] sm:$0xff]
    %v85 = vld [vmem:[#allocation2 + $0x98] sm:$0xff]
    %v86 = vld [vmem:[#allocation2 + $0xa0] sm:$0xff]
    %v87 = vld [vmem:[#allocation2 + $0xa8] sm:$0xff]
    %v88 = vld [vmem:[#allocation2 + $0xb0] sm:$0xff]
    %v89 = vld [vmem:[#allocation2 + $0xb8] sm:$0xff]
    %v90 = vld [vmem:[#allocation2 + $0xc0] sm:$0xff]
    %v91 = vld [vmem:[#allocation2 + $0xc8] sm:$0xff]
    %v92 = vld [vmem:[#allocation2 + $0xd0] sm:$0xff]
    %v93 = vld [vmem:[#allocation2 + $0xd8] sm:$0xff]
    %v94 = vld [vmem:[#allocation2 + $0xe0] sm:$0xff]
    %v95 = vld [vmem:[#allocation2 + $0xe8] sm:$0xff]
    %v96 = vld [vmem:[#allocation2 + $0xf0] sm:$0xff]
    %v97 = vld [vmem:[#allocation2 + $0xf8] sm:$0xff]
    %v98 = vld [vmem:[#allocation2 + $0x100] sm:$0xff]
    %v99 = vld [vmem:[#allocation2 + $0x108] sm:$0xff]
    %v100 = vld [vmem:[#allocation2 + $0x110] sm:$0xff]
    %v101 = vld [vmem:[#allocation2 + $0x118] sm:$0xff]
    %v102 = vld [vmem:[#allocation2 + $0x120] sm:$0xff]
    %v103 = vld [vmem:[#allocation2 + $0x128] sm:$0xff]
    %v104 = vld [vmem:[#allocation2 + $0x130] sm:$0xff]
    %v105 = vld [vmem:[#allocation2 + $0x138] sm:$0xff]
    %v106 = vld [vmem:[#allocation2 + $0x140] sm:$0xff]
    %v107 = vld [vmem:[#allocation2 + $0x148] sm:$0xff]
    %v108 = vld [vmem:[#allocation2 + $0x150] sm:$0xff]
    %v109 = vld [vmem:[#allocation2 + $0x158] sm:$0xff]
    %v110 = vld [vmem:[#allocation2 + $0x160] sm:$0xff]
    %v111 = vld [vmem:[#allocation2 + $0x168] sm:$0xff]
    %v112 = vld [vmem:[#allocation2 + $0x170] sm:$0xff]
    %v113 = vld [vmem:[#allocation2 + $0x178] sm:$0xff]
    %v114 = vld [vmem:[#allocation2 + $0x180] sm:$0xff]
    %v115 = vld [vmem:[#allocation2 + $0x188] sm:$0xff]
    %v116 = vld [vmem:[#allocation2 + $0x190] sm:$0xff]
    %v117 = vld [vmem:[#allocation2 + $0x198] sm:$0xff]
    %v118 = vld [vmem:[#allocation2 + $0x1a0] sm:$0xff]
    %v119 = vld [vmem:[#allocation2 + $0x1a8] sm:$0xff]
    %v120 = vld [vmem:[#allocation2 + $0x1b0] sm:$0xff]
    %v121 = vld [vmem:[#allocation2 + $0x1b8] sm:$0xff]
    %v122 = vld [vmem:[#allocation2 + $0x1c0] sm:$0xff]
    %v123 = vld [vmem:[#allocation2 + $0x1c8] sm:$0xff]
    %v124 = vld [vmem:[#allocation2 + $0x1d0] sm:$0xff]
    %v125 = vld [vmem:[#allocation2 + $0x1d8] sm:$0xff]
    %v126 = vld [vmem:[#allocation2 + $0x1e0] sm:$0xff]
    %v127 = vld [vmem:[#allocation2 + $0x1e8] sm:$0xff]
    %v128 = vld [vmem:[#allocation2 + $0x1f0] sm:$0xff]
    %v129 = vld [vmem:[#allocation2 + $0x1f8] sm:$0xff]
    %v130 = vld [vmem:[#allocation5] sm:$0xff]
    %v131 = vld [vmem:[#allocation5 + $0x8] sm:$0xff]
    %v132 = vld [vmem:[#allocation5 + $0x10] sm:$0xff]
    %v133 = vld [vmem:[#allocation5 + $0x18] sm:$0xff]
    %v134 = vld [vmem:[#allocation5 + $0x20] sm:$0xff]
    %v135 = vld [vmem:[#allocation5 + $0x28] sm:$0xff]
    %v136 = vld [vmem:[#allocation5 + $0x30] sm:$0xff]
    %v137 = vld [vmem:[#allocation5 + $0x38] sm:$0xff]
    %v138 = vld [vmem:[#allocation5 + $0x40] sm:$0xff]
    %v139 = vld [vmem:[#allocation5 + $0x48] sm:$0xff]
    %v140 = vld [vmem:[#allocation5 + $0x50] sm:$0xff]
    %v141 = vld [vmem:[#allocation5 + $0x58] sm:$0xff]
    %v142 = vld [vmem:[#allocation5 + $0x60] sm:$0xff]
    %v143 = vld [vmem:[#allocation5 + $0x68] sm:$0xff]
    %v144 = vld [vmem:[#allocation5 + $0x70] sm:$0xff]
    %v145 = vld [vmem:[#allocation5 + $0x78] sm:$0xff]
    %v146 = vunpack.c.0.s8 %v130
    %v147 = vunpack.c.1.s8 %v130
    %v148 = vunpack.c.2.s8 %v130
    %v149 = vunpack.c.3.s8 %v130
    %v150 = vunpack.c.0.s8 %v131
    %v151 = vunpack.c.1.s8 %v131
    %v152 = vunpack.c.2.s8 %v131
    %v153 = vunpack.c.3.s8 %v131
    %v154 = vunpack.c.0.s8 %v132
    %v155 = vunpack.c.1.s8 %v132
    %v156 = vunpack.c.2.s8 %v132
    %v157 = vunpack.c.3.s8 %v132
    %v158 = vunpack.c.0.s8 %v133
    %v159 = vunpack.c.1.s8 %v133
    %v160 = vunpack.c.2.s8 %v133
    %v161 = vunpack.c.3.s8 %v133
    %v162 = vunpack.c.0.s8 %v134
    %v163 = vunpack.c.1.s8 %v134
    %v164 = vunpack.c.2.s8 %v134
    %v165 = vunpack.c.3.s8 %v134
    %v166 = vunpack.c.0.s8 %v135
    %v167 = vunpack.c.1.s8 %v135
    %v168 = vunpack.c.2.s8 %v135
    %v169 = vunpack.c.3.s8 %v135
    %v170 = vunpack.c.0.s8 %v136
    %v171 = vunpack.c.1.s8 %v136
    %v172 = vunpack.c.2.s8 %v136
    %v173 = vunpack.c.3.s8 %v136
    %v174 = vunpack.c.0.s8 %v137
    %v175 = vunpack.c.1.s8 %v137
    %v176 = vunpack.c.2.s8 %v137
    %v177 = vunpack.c.3.s8 %v137
    %v178 = vunpack.c.0.s8 %v138
    %v179 = vunpack.c.1.s8 %v138
    %v180 = vunpack.c.2.s8 %v138
    %v181 = vunpack.c.3.s8 %v138
    %v182 = vunpack.c.0.s8 %v139
    %v183 = vunpack.c.1.s8 %v139
    %v184 = vunpack.c.2.s8 %v139
    %v185 = vunpack.c.3.s8 %v139
    %v186 = vunpack.c.0.s8 %v140
    %v187 = vunpack.c.1.s8 %v140
    %v188 = vunpack.c.2.s8 %v140
    %v189 = vunpack.c.3.s8 %v140
    %v190 = vunpack.c.0.s8 %v141
    %v191 = vunpack.c.1.s8 %v141
    %v192 = vunpack.c.2.s8 %v141
    %v193 = vunpack.c.3.s8 %v141
    %v194 = vunpack.c.0.s8 %v142
    %v195 = vunpack.c.1.s8 %v142
    %v196 = vunpack.c.2.s8 %v142
    %v197 = vunpack.c.3.s8 %v142
    %v198 = vunpack.c.0.s8 %v143
    %v199 = vunpack.c.1.s8 %v143
    %v200 = vunpack.c.2.s8 %v143
    %v201 = vunpack.c.3.s8 %v143
    %v202 = vunpack.c.0.s8 %v144
    %v203 = vunpack.c.1.s8 %v144
    %v204 = vunpack.c.2.s8 %v144
    %v205 = vunpack.c.3.s8 %v144
    %v206 = vunpack.c.0.s8 %v145
    %v207 = vunpack.c.1.s8 %v145
    %v208 = vunpack.c.2.s8 %v145
    %v209 = vunpack.c.3.s8 %v145
    %v210 = vcvt.s32.f32 %v146
    %v211 = vcvt.s32.f32 %v147
    %v212 = vcvt.s32.f32 %v148
    %v213 = vcvt.s32.f32 %v149
    %v214 = vcvt.s32.f32 %v150
    %v215 = vcvt.s32.f32 %v151
    %v216 = vcvt.s32.f32 %v152
    %v217 = vcvt.s32.f32 %v153
    %v218 = vcvt.s32.f32 %v154
    %v219 = vcvt.s32.f32 %v155
    %v220 = vcvt.s32.f32 %v156
    %v221 = vcvt.s32.f32 %v157
    %v222 = vcvt.s32.f32 %v158
    %v223 = vcvt.s32.f32 %v159
    %v224 = vcvt.s32.f32 %v160
    %v225 = vcvt.s32.f32 %v161
    %v226 = vcvt.s32.f32 %v162
    %v227 = vcvt.s32.f32 %v163
    %v228 = vcvt.s32.f32 %v164
    %v229 = vcvt.s32.f32 %v165
    %v230 = vcvt.s32.f32 %v166
    %v231 = vcvt.s32.f32 %v167
    %v232 = vcvt.s32.f32 %v168
    %v233 = vcvt.s32.f32 %v169
    %v234 = vcvt.s32.f32 %v170
    %v235 = vcvt.s32.f32 %v171
    %v236 = vcvt.s32.f32 %v172
    %v237 = vcvt.s32.f32 %v173
    %v238 = vcvt.s32.f32 %v174
    %v239 = vcvt.s32.f32 %v175
    %v240 = vcvt.s32.f32 %v176
    %v241 = vcvt.s32.f32 %v177
    %v242 = vcvt.s32.f32 %v178
    %v243 = vcvt.s32.f32 %v179
    %v244 = vcvt.s32.f32 %v180
    %v245 = vcvt.s32.f32 %v181
    %v246 = vcvt.s32.f32 %v182
    %v247 = vcvt.s32.f32 %v183
    %v248 = vcvt.s32.f32 %v184
    %v249 = vcvt.s32.f32 %v185
    %v250 = vcvt.s32.f32 %v186
    %v251 = vcvt.s32.f32 %v187
    %v252 = vcvt.s32.f32 %v188
    %v253 = vcvt.s32.f32 %v189
    %v254 = vcvt.s32.f32 %v190
    %v255 = vcvt.s32.f32 %v191
    %v256 = vcvt.s32.f32 %v192
    %v257 = vcvt.s32.f32 %v193
    %v258 = vcvt.s32.f32 %v194
    %v259 = vcvt.s32.f32 %v195
    %v260 = vcvt.s32.f32 %v196
    %v261 = vcvt.s32.f32 %v197
    %v262 = vcvt.s32.f32 %v198
    %v263 = vcvt.s32.f32 %v199
    %v264 = vcvt.s32.f32 %v200
    %v265 = vcvt.s32.f32 %v201
    %v266 = vcvt.s32.f32 %v202
    %v267 = vcvt.s32.f32 %v203
    %v268 = vcvt.s32.f32 %v204
    %v269 = vcvt.s32.f32 %v205
    %v270 = vcvt.s32.f32 %v206
    %v271 = vcvt.s32.f32 %v207
    %v272 = vcvt.s32.f32 %v208
    %v273 = vcvt.s32.f32 %v209
    %v274 = vmax.f32 %v66, %v70
    %v275 = vmax.f32 %v67, %v71
    %v276 = vmax.f32 %v68, %v72
    %v277 = vmax.f32 %v69, %v73
    %v278 = vmax.f32 %v274, %v74
    %v279 = vmax.f32 %v275, %v75
    %v280 = vmax.f32 %v276, %v76
    %v281 = vmax.f32 %v277, %v77
    %v282 = vmax.f32 %v278, %v78
    %v283 = vmax.f32 %v279, %v79
    %v284 = vmax.f32 %v280, %v80
    %v285 = vmax.f32 %v281, %v81
    %v286 = vmax.f32 %v282, %v82
    %v287 = vmax.f32 %v283, %v83
    %v288 = vmax.f32 %v284, %v84
    %v289 = vmax.f32 %v285, %v85
    %v290 = vmax.f32 %v286, %v86
    %v291 = vmax.f32 %v287, %v87
    %v292 = vmax.f32 %v288, %v88
    %v293 = vmax.f32 %v289, %v89
    %v294 = vmax.f32 %v290, %v90
    %v295 = vmax.f32 %v291, %v91
    %v296 = vmax.f32 %v292, %v92
    %v297 = vmax.f32 %v293, %v93
    %v298 = vmax.f32 %v294, %v94
    %v299 = vmax.f32 %v295, %v95
    %v300 = vmax.f32 %v296, %v96
    %v301 = vmax.f32 %v297, %v97
    %v302 = vmax.f32 %v298, %v98
    %v303 = vmax.f32 %v299, %v99
    %v304 = vmax.f32 %v300, %v100
    %v305 = vmax.f32 %v301, %v101
    %v306 = vmax.f32 %v302, %v102
    %v307 = vmax.f32 %v303, %v103
    %v308 = vmax.f32 %v304, %v104
    %v309 = vmax.f32 %v305, %v105
    %v310 = vmax.f32 %v306, %v106
    %v311 = vmax.f32 %v307, %v107
    %v312 = vmax.f32 %v308, %v108
    %v313 = vmax.f32 %v309, %v109
    %v314 = vmax.f32 %v310, %v110
    %v315 = vmax.f32 %v311, %v111
    %v316 = vmax.f32 %v312, %v112
    %v317 = vmax.f32 %v313, %v113
    %v318 = vmax.f32 %v314, %v114
    %v319 = vmax.f32 %v315, %v115
    %v320 = vmax.f32 %v316, %v116
    %v321 = vmax.f32 %v317, %v117
    %v322 = vmax.f32 %v318, %v118
    %v323 = vmax.f32 %v319, %v119
    %v324 = vmax.f32 %v320, %v120
    %v325 = vmax.f32 %v321, %v121
    %v326 = vmax.f32 %v322, %v122
    %v327 = vmax.f32 %v323, %v123
    %v328 = vmax.f32 %v324, %v124
    %v329 = vmax.f32 %v325, %v125
    %v330 = vmax.f32 %v326, %v126
    %v331 = vmax.f32 %v327, %v127
    %v332 = vmax.f32 %v328, %v128
    %v333 = vmax.f32 %v329, %v129
    %v334 = vmax.f32 %v330, %v331
    %v335 = vmax.f32 %v332, %v333
    %v336 = vmax.f32 %v334, %v335
    %v337 = vrot.slane %v336, 4
    %v338 = vmax.f32 %v336, %v337
    %v339 = vrot.slane %v338, 2
    %v340 = vmax.f32 %v338, %v339
    %v341 = vrot.slane %v340, 1
    %v342 = vmax.f32 %v340, %v341
    %v343 = vld [vmem:[#allocation7] sm:$0x1]
    %v344 = vmax.f32 %v343, %v342
    %v346 = vlaneseq
    %v347 = vshrl.u32 %v346, 7
    %v348 = vsub.s32 0, %v347
    %v349 = vrot.slane %v344, %v348
    %v351 = vsub.f32 %v66, %v349
    %v352 = vsub.f32 %v67, %v349
    %v353 = vsub.f32 %v68, %v349
    %v354 = vsub.f32 %v69, %v349
    %v355 = vsub.f32 %v70, %v349
    %v356 = vsub.f32 %v71, %v349
    %v357 = vsub.f32 %v72, %v349
    %v358 = vsub.f32 %v73, %v349
    %v359 = vsub.f32 %v74, %v349
    %v360 = vsub.f32 %v75, %v349
    %v361 = vsub.f32 %v76, %v349
    %v362 = vsub.f32 %v77, %v349
    %v363 = vsub.f32 %v78, %v349
    %v364 = vsub.f32 %v79, %v349
    %v365 = vsub.f32 %v80, %v349
    %v366 = vsub.f32 %v81, %v349
    %v367 = vsub.f32 %v82, %v349
    %v368 = vsub.f32 %v83, %v349
    %v369 = vsub.f32 %v84, %v349
    %v370 = vsub.f32 %v85, %v349
    %v371 = vsub.f32 %v86, %v349
    %v372 = vsub.f32 %v87, %v349
    %v373 = vsub.f32 %v88, %v349
    %v374 = vsub.f32 %v89, %v349
    %v375 = vsub.f32 %v90, %v349
    %v376 = vsub.f32 %v91, %v349
    %v377 = vsub.f32 %v92, %v349
    %v378 = vsub.f32 %v93, %v349
    %v379 = vsub.f32 %v94, %v349
    %v380 = vsub.f32 %v95, %v349
    %v381 = vsub.f32 %v96, %v349
    %v382 = vsub.f32 %v97, %v349
    %v383 = vsub.f32 %v98, %v349
    %v384 = vsub.f32 %v99, %v349
    %v385 = vsub.f32 %v100, %v349
    %v386 = vsub.f32 %v101, %v349
    %v387 = vsub.f32 %v102, %v349
    %v388 = vsub.f32 %v103, %v349
    %v389 = vsub.f32 %v104, %v349
    %v390 = vsub.f32 %v105, %v349
    %v391 = vsub.f32 %v106, %v349
    %v392 = vsub.f32 %v107, %v349
    %v393 = vsub.f32 %v108, %v349
    %v394 = vsub.f32 %v109, %v349
    %v395 = vsub.f32 %v110, %v349
    %v396 = vsub.f32 %v111, %v349
    %v397 = vsub.f32 %v112, %v349
    %v398 = vsub.f32 %v113, %v349
    %v399 = vsub.f32 %v114, %v349
    %v400 = vsub.f32 %v115, %v349
    %v401 = vsub.f32 %v116, %v349
    %v402 = vsub.f32 %v117, %v349
    %v403 = vsub.f32 %v118, %v349
    %v404 = vsub.f32 %v119, %v349
    %v405 = vsub.f32 %v120, %v349
    %v406 = vsub.f32 %v121, %v349
    %v407 = vsub.f32 %v122, %v349
    %v408 = vsub.f32 %v123, %v349
    %v409 = vsub.f32 %v124, %v349
    %v410 = vsub.f32 %v125, %v349
    %v411 = vsub.f32 %v126, %v349
    %v412 = vsub.f32 %v127, %v349
    %v413 = vsub.f32 %v128, %v349
    %v414 = vsub.f32 %v129, %v349
    %v415 = vmul.f32 %v351, 1.442695
    %v416 = vpow.pop %v415
    %v417 = vmul.f32 %v352, 1.442695
    %v418 = vpow.pop %v417
    %v419 = vmul.f32 %v353, 1.442695
    %v420 = vpow.pop %v419
    %v421 = vmul.f32 %v354, 1.442695
    %v422 = vpow.pop %v421
    %v423 = vmul.f32 %v355, 1.442695
    %v424 = vpow.pop %v423
    %v425 = vmul.f32 %v356, 1.442695
    %v426 = vpow.pop %v425
    %v427 = vmul.f32 %v357, 1.442695
    %v428 = vpow.pop %v427
    %v429 = vmul.f32 %v358, 1.442695
    %v430 = vpow.pop %v429
    %v431 = vmul.f32 %v359, 1.442695
    %v432 = vpow.pop %v431
    %v433 = vmul.f32 %v360, 1.442695
    %v434 = vpow.pop %v433
    %v435 = vmul.f32 %v361, 1.442695
    %v436 = vpow.pop %v435
    %v437 = vmul.f32 %v362, 1.442695
    %v438 = vpow.pop %v437
    %v439 = vmul.f32 %v363, 1.442695
    %v440 = vpow.pop %v439
    %v441 = vmul.f32 %v364, 1.442695
    %v442 = vpow.pop %v441
    %v443 = vmul.f32 %v365, 1.442695
    %v444 = vpow.pop %v443
    %v445 = vmul.f32 %v366, 1.442695
    %v446 = vpow.pop %v445
    %v447 = vmul.f32 %v367, 1.442695
    %v448 = vpow.pop %v447
    %v449 = vmul.f32 %v368, 1.442695
    %v450 = vpow.pop %v449
    %v451 = vmul.f32 %v369, 1.442695
    %v452 = vpow.pop %v451
    %v453 = vmul.f32 %v370, 1.442695
    %v454 = vpow.pop %v453
    %v455 = vmul.f32 %v371, 1.442695
    %v456 = vpow.pop %v455
    %v457 = vmul.f32 %v372, 1.442695
    %v458 = vpow.pop %v457
    %v459 = vmul.f32 %v373, 1.442695
    %v460 = vpow.pop %v459
    %v461 = vmul.f32 %v374, 1.442695
    %v462 = vpow.pop %v461
    %v463 = vmul.f32 %v375, 1.442695
    %v464 = vpow.pop %v463
    %v465 = vmul.f32 %v376, 1.442695
    %v466 = vpow.pop %v465
    %v467 = vmul.f32 %v377, 1.442695
    %v468 = vpow.pop %v467
    %v469 = vmul.f32 %v378, 1.442695
    %v470 = vpow.pop %v469
    %v471 = vmul.f32 %v379, 1.442695
    %v472 = vpow.pop %v471
    %v473 = vmul.f32 %v380, 1.442695
    %v474 = vpow.pop %v473
    %v475 = vmul.f32 %v381, 1.442695
    %v476 = vpow.pop %v475
    %v477 = vmul.f32 %v382, 1.442695
    %v478 = vpow.pop %v477
    %v479 = vmul.f32 %v383, 1.442695
    %v480 = vpow.pop %v479
    %v481 = vmul.f32 %v384, 1.442695
    %v482 = vpow.pop %v481
    %v483 = vmul.f32 %v385, 1.442695
    %v484 = vpow.pop %v483
    %v485 = vmul.f32 %v386, 1.442695
    %v486 = vpow.pop %v485
    %v487 = vmul.f32 %v387, 1.442695
    %v488 = vpow.pop %v487
    %v489 = vmul.f32 %v388, 1.442695
    %v490 = vpow.pop %v489
    %v491 = vmul.f32 %v389, 1.442695
    %v492 = vpow.pop %v491
    %v493 = vmul.f32 %v390, 1.442695
    %v494 = vpow.pop %v493
    %v495 = vmul.f32 %v391, 1.442695
    %v496 = vpow.pop %v495
    %v497 = vmul.f32 %v392, 1.442695
    %v498 = vpow.pop %v497
    %v499 = vmul.f32 %v393, 1.442695
    %v500 = vpow.pop %v499
    %v501 = vmul.f32 %v394, 1.442695
    %v502 = vpow.pop %v501
    %v503 = vmul.f32 %v395, 1.442695
    %v504 = vpow.pop %v503
    %v505 = vmul.f32 %v396, 1.442695
    %v506 = vpow.pop %v505
    %v507 = vmul.f32 %v397, 1.442695
    %v508 = vpow.pop %v507
    %v509 = vmul.f32 %v398, 1.442695
    %v510 = vpow.pop %v509
    %v511 = vmul.f32 %v399, 1.442695
    %v512 = vpow.pop %v511
    %v513 = vmul.f32 %v400, 1.442695
    %v514 = vpow.pop %v513
    %v515 = vmul.f32 %v401, 1.442695
    %v516 = vpow.pop %v515
    %v517 = vmul.f32 %v402, 1.442695
    %v518 = vpow.pop %v517
    %v519 = vmul.f32 %v403, 1.442695
    %v520 = vpow.pop %v519
    %v521 = vmul.f32 %v404, 1.442695
    %v522 = vpow.pop %v521
    %v523 = vmul.f32 %v405, 1.442695
    %v524 = vpow.pop %v523
    %v525 = vmul.f32 %v406, 1.442695
    %v526 = vpow.pop %v525
    %v527 = vmul.f32 %v407, 1.442695
    %v528 = vpow.pop %v527
    %v529 = vmul.f32 %v408, 1.442695
    %v530 = vpow.pop %v529
    %v531 = vmul.f32 %v409, 1.442695
    %v532 = vpow.pop %v531
    %v533 = vmul.f32 %v410, 1.442695
    %v534 = vpow.pop %v533
    %v535 = vmul.f32 %v411, 1.442695
    %v536 = vpow.pop %v535
    %v537 = vmul.f32 %v412, 1.442695
    %v538 = vpow.pop %v537
    %v539 = vmul.f32 %v413, 1.442695
    %v540 = vpow.pop %v539
    %v541 = vmul.f32 %v414, 1.442695
    %v542 = vpow.pop %v541
    %v543 = vadd.f32 %v416, %v418
    %v544 = vadd.f32 %v543, %v420
    %v545 = vadd.f32 %v544, %v422
    %v546 = vadd.f32 %v545, %v424
    %v547 = vadd.f32 %v546, %v426
    %v548 = vadd.f32 %v547, %v428
    %v549 = vadd.f32 %v548, %v430
    %v550 = vadd.f32 %v549, %v432
    %v551 = vadd.f32 %v550, %v434
    %v552 = vadd.f32 %v551, %v436
    %v553 = vadd.f32 %v552, %v438
    %v554 = vadd.f32 %v553, %v440
    %v555 = vadd.f32 %v554, %v442
    %v556 = vadd.f32 %v555, %v444
    %v557 = vadd.f32 %v556, %v446
    %v558 = vadd.f32 %v557, %v448
    %v559 = vadd.f32 %v558, %v450
    %v560 = vadd.f32 %v559, %v452
    %v561 = vadd.f32 %v560, %v454
    %v562 = vadd.f32 %v561, %v456
    %v563 = vadd.f32 %v562, %v458
    %v564 = vadd.f32 %v563, %v460
    %v565 = vadd.f32 %v564, %v462
    %v566 = vadd.f32 %v565, %v464
    %v567 = vadd.f32 %v566, %v466
    %v568 = vadd.f32 %v567, %v468
    %v569 = vadd.f32 %v568, %v470
    %v570 = vadd.f32 %v569, %v472
    %v571 = vadd.f32 %v570, %v474
    %v572 = vadd.f32 %v571, %v476
    %v573 = vadd.f32 %v572, %v478
    %v574 = vadd.f32 %v573, %v480
    %v575 = vadd.f32 %v574, %v482
    %v576 = vadd.f32 %v575, %v484
    %v577 = vadd.f32 %v576, %v486
    %v578 = vadd.f32 %v577, %v488
    %v579 = vadd.f32 %v578, %v490
    %v580 = vadd.f32 %v579, %v492
    %v581 = vadd.f32 %v580, %v494
    %v582 = vadd.f32 %v581, %v496
    %v583 = vadd.f32 %v582, %v498
    %v584 = vadd.f32 %v583, %v500
    %v585 = vadd.f32 %v584, %v502
    %v586 = vadd.f32 %v585, %v504
    %v587 = vadd.f32 %v586, %v506
    %v588 = vadd.f32 %v587, %v508
    %v589 = vadd.f32 %v588, %v510
    %v590 = vadd.f32 %v589, %v512
    %v591 = vadd.f32 %v590, %v514
    %v592 = vadd.f32 %v591, %v516
    %v593 = vadd.f32 %v592, %v518
    %v594 = vadd.f32 %v593, %v520
    %v595 = vadd.f32 %v594, %v522
    %v596 = vadd.f32 %v595, %v524
    %v597 = vadd.f32 %v596, %v526
    %v598 = vadd.f32 %v597, %v528
    %v599 = vadd.f32 %v598, %v530
    %v600 = vadd.f32 %v599, %v532
    %v601 = vadd.f32 %v600, %v534
    %v602 = vadd.f32 %v601, %v536
    %v603 = vadd.f32 %v602, %v538
    %v604 = vadd.f32 %v603, %v540
    %v605 = vadd.f32 %v604, %v542
    %v606 = vrot.slane %v605, 4
    %v607 = vadd.f32 %v605, %v606
    %v608 = vrot.slane %v607, 2
    %v609 = vadd.f32 %v607, %v608
    %v610 = vrot.slane %v609, 1
    %v611 = vadd.f32 %v609, %v610
    %v612 = vld [vmem:[#allocation8] sm:$0x1]
    %v613 = vsub.f32 %v343, %v344
    %v614 = vmul.f32 %v613, 1.442695
    %v615 = vpow.pop %v614
    %v616 = vmul.f32 %v612, %v615
    %v617 = vadd.f32 %v616, %v611
    %618 = vst [vmem:[#allocation8] sm:$0x1] %v617
    %619 = vst [vmem:[#allocation7] sm:$0x1] %v344
    %v620 = vld [vmem:[#allocation10] sm:$0x1]
    %v621 = vmul.f32 %v66, %v210
    %v622 = vmul.f32 %v67, %v211
    %v623 = vmul.f32 %v68, %v212
    %v624 = vmul.f32 %v69, %v213
    %v625 = vmul.f32 %v70, %v214
    %v626 = vmul.f32 %v71, %v215
    %v627 = vmul.f32 %v72, %v216
    %v628 = vmul.f32 %v73, %v217
    %v629 = vmul.f32 %v74, %v218
    %v630 = vmul.f32 %v75, %v219
    %v631 = vmul.f32 %v76, %v220
    %v632 = vmul.f32 %v77, %v221
    %v633 = vmul.f32 %v78, %v222
    %v634 = vmul.f32 %v79, %v223
    %v635 = vmul.f32 %v80, %v224
    %v636 = vmul.f32 %v81, %v225
    %v637 = vmul.f32 %v82, %v226
    %v638 = vmul.f32 %v83, %v227
    %v639 = vmul.f32 %v84, %v228
    %v640 = vmul.f32 %v85, %v229
    %v641 = vmul.f32 %v86, %v230
    %v642 = vmul.f32 %v87, %v231
    %v643 = vmul.f32 %v88, %v232
    %v644 = vmul.f32 %v89, %v233
    %v645 = vmul.f32 %v90, %v234
    %v646 = vmul.f32 %v91, %v235
    %v647 = vmul.f32 %v92, %v236
    %v648 = vmul.f32 %v93, %v237
    %v649 = vmul.f32 %v94, %v238
    %v650 = vmul.f32 %v95, %v239
    %v651 = vmul.f32 %v96, %v240
    %v652 = vmul.f32 %v97, %v241
    %v653 = vmul.f32 %v98, %v242
    %v654 = vmul.f32 %v99, %v243
    %v655 = vmul.f32 %v100, %v244
    %v656 = vmul.f32 %v101, %v245
    %v657 = vmul.f32 %v102, %v246
    %v658 = vmul.f32 %v103, %v247
    %v659 = vmul.f32 %v104, %v248
    %v660 = vmul.f32 %v105, %v249
    %v661 = vmul.f32 %v106, %v250
    %v662 = vmul.f32 %v107, %v251
    %v663 = vmul.f32 %v108, %v252
    %v664 = vmul.f32 %v109, %v253
    %v665 = vmul.f32 %v110, %v254
    %v666 = vmul.f32 %v111, %v255
    %v667 = vmul.f32 %v112, %v256
    %v668 = vmul.f32 %v113, %v257
    %v669 = vmul.f32 %v114, %v258
    %v670 = vmul.f32 %v115, %v259
    %v671 = vmul.f32 %v116, %v260
    %v672 = vmul.f32 %v117, %v261
    %v673 = vmul.f32 %v118, %v262
    %v674 = vmul.f32 %v119, %v263
    %v675 = vmul.f32 %v120, %v264
    %v676 = vmul.f32 %v121, %v265
    %v677 = vmul.f32 %v122, %v266
    %v678 = vmul.f32 %v123, %v267
    %v679 = vmul.f32 %v124, %v268
    %v680 = vmul.f32 %v125, %v269
    %v681 = vmul.f32 %v126, %v270
    %v682 = vmul.f32 %v127, %v271
    %v683 = vmul.f32 %v128, %v272
    %v684 = vmul.f32 %v129, %v273
    %v685 = vadd.f32 %v621, %v622
    %v686 = vadd.f32 %v685, %v623
    %v687 = vadd.f32 %v686, %v624
    %v688 = vadd.f32 %v687, %v625
    %v689 = vadd.f32 %v688, %v626
    %v690 = vadd.f32 %v689, %v627
    %v691 = vadd.f32 %v690, %v628
    %v692 = vadd.f32 %v691, %v629
    %v693 = vadd.f32 %v692, %v630
    %v694 = vadd.f32 %v693, %v631
    %v695 = vadd.f32 %v694, %v632
    %v696 = vadd.f32 %v695, %v633
    %v697 = vadd.f32 %v696, %v634
    %v698 = vadd.f32 %v697, %v635
    %v699 = vadd.f32 %v698, %v636
    %v700 = vadd.f32 %v699, %v637
    %v701 = vadd.f32 %v700, %v638
    %v702 = vadd.f32 %v701, %v639
    %v703 = vadd.f32 %v702, %v640
    %v704 = vadd.f32 %v703, %v641
    %v705 = vadd.f32 %v704, %v642
    %v706 = vadd.f32 %v705, %v643
    %v707 = vadd.f32 %v706, %v644
    %v708 = vadd.f32 %v707, %v645
    %v709 = vadd.f32 %v708, %v646
    %v710 = vadd.f32 %v709, %v647
    %v711 = vadd.f32 %v710, %v648
    %v712 = vadd.f32 %v711, %v649
    %v713 = vadd.f32 %v712, %v650
    %v714 = vadd.f32 %v713, %v651
    %v715 = vadd.f32 %v714, %v652
    %v716 = vadd.f32 %v715, %v653
    %v717 = vadd.f32 %v716, %v654
    %v718 = vadd.f32 %v717, %v655
    %v719 = vadd.f32 %v718, %v656
    %v720 = vadd.f32 %v719, %v657
    %v721 = vadd.f32 %v720, %v658
    %v722 = vadd.f32 %v721, %v659
    %v723 = vadd.f32 %v722, %v660
    %v724 = vadd.f32 %v723, %v661
    %v725 = vadd.f32 %v724, %v662
    %v726 = vadd.f32 %v725, %v663
    %v727 = vadd.f32 %v726, %v664
    %v728 = vadd.f32 %v727, %v665
    %v729 = vadd.f32 %v728, %v666
    %v730 = vadd.f32 %v729, %v667
    %v731 = vadd.f32 %v730, %v668
    %v732 = vadd.f32 %v731, %v669
    %v733 = vadd.f32 %v732, %v670
    %v734 = vadd.f32 %v733, %v671
    %v735 = vadd.f32 %v734, %v672
    %v736 = vadd.f32 %v735, %v673
    %v737 = vadd.f32 %v736, %v674
    %v738 = vadd.f32 %v737, %v675
    %v739 = vadd.f32 %v738, %v676
    %v740 = vadd.f32 %v739, %v677
    %v741 = vadd.f32 %v740, %v678
    %v742 = vadd.f32 %v741, %v679
    %v743 = vadd.f32 %v742, %v680
    %v744 = vadd.f32 %v743, %v681
    %v745 = vadd.f32 %v744, %v682
    %v746 = vadd.f32 %v745, %v683
    %v747 = vadd.f32 %v746, %v684
    %v748 = vrot.slane %v747, 4
    %v749 = vadd.f32 %v747, %v748
    %v750 = vrot.slane %v749, 2
    %v751 = vadd.f32 %v749, %v750
    %v752 = vrot.slane %v751, 1
    %v753 = vadd.f32 %v751, %v752
    %v754 = vadd.f32 %v620, %v753
    %755 = vst [vmem:[#allocation10] sm:$0x1] %v754
    %v756 = vld [vmem:[#allocation11] sm:$0x1]
    %v757 = vadd.f32 %v210, %v211
    %v758 = vadd.f32 %v757, %v212
    %v759 = vadd.f32 %v758, %v213
    %v760 = vadd.f32 %v759, %v214
    %v761 = vadd.f32 %v760, %v215
    %v762 = vadd.f32 %v761, %v216
    %v763 = vadd.f32 %v762, %v217
    %v764 = vadd.f32 %v763, %v218
    %v765 = vadd.f32 %v764, %v219
    %v766 = vadd.f32 %v765, %v220
    %v767 = vadd.f32 %v766, %v221
    %v768 = vadd.f32 %v767, %v222
    %v769 = vadd.f32 %v768, %v223
    %v770 = vadd.f32 %v769, %v224
    %v771 = vadd.f32 %v770, %v225
    %v772 = vadd.f32 %v771, %v226
    %v773 = vadd.f32 %v772, %v227
    %v774 = vadd.f32 %v773, %v228
    %v775 = vadd.f32 %v774, %v229
    %v776 = vadd.f32 %v775, %v230
    %v777 = vadd.f32 %v776, %v231
    %v778 = vadd.f32 %v777, %v232
    %v779 = vadd.f32 %v778, %v233
    %v780 = vadd.f32 %v779, %v234
    %v781 = vadd.f32 %v780, %v235
    %v782 = vadd.f32 %v781, %v236
    %v783 = vadd.f32 %v782, %v237
    %v784 = vadd.f32 %v783, %v238
    %v785 = vadd.f32 %v784, %v239
    %v786 = vadd.f32 %v785, %v240
    %v787 = vadd.f32 %v786, %v241
    %v788 = vadd.f32 %v787, %v242
    %v789 = vadd.f32 %v788, %v243
    %v790 = vadd.f32 %v789, %v244
    %v791 = vadd.f32 %v790, %v245
    %v792 = vadd.f32 %v791, %v246
    %v793 = vadd.f32 %v792, %v247
    %v794 = vadd.f32 %v793, %v248
    %v795 = vadd.f32 %v794, %v249
    %v796 = vadd.f32 %v795, %v250
    %v797 = vadd.f32 %v796, %v251
    %v798 = vadd.f32 %v797, %v252
    %v799 = vadd.f32 %v798, %v253
    %v800 = vadd.f32 %v799, %v254
    %v801 = vadd.f32 %v800, %v255
    %v802 = vadd.f32 %v801, %v256
    %v803 = vadd.f32 %v802, %v257
    %v804 = vadd.f32 %v803, %v258
    %v805 = vadd.f32 %v804, %v259
    %v806 = vadd.f32 %v805, %v260
    %v807 = vadd.f32 %v806, %v261
    %v808 = vadd.f32 %v807, %v262
    %v809 = vadd.f32 %v808, %v263
    %v810 = vadd.f32 %v809, %v264
    %v811 = vadd.f32 %v810, %v265
    %v812 = vadd.f32 %v811, %v266
    %v813 = vadd.f32 %v812, %v267
    %v814 = vadd.f32 %v813, %v268
    %v815 = vadd.f32 %v814, %v269
    %v816 = vadd.f32 %v815, %v270
    %v817 = vadd.f32 %v816, %v271
    %v818 = vadd.f32 %v817, %v272
    %v819 = vadd.f32 %v818, %v273
    %v820 = vrot.slane %v819, 4
    %v821 = vadd.f32 %v819, %v820
    %v822 = vrot.slane %v821, 2
    %v823 = vadd.f32 %v821, %v822
    %v824 = vrot.slane %v823, 1
    %v825 = vadd.f32 %v823, %v824
    %v826 = vadd.f32 %v756, %v825
    %827 = vst [vmem:[#allocation11] sm:$0x1] %v826
    // Predicated region
    $region22: #{tpu_custom_call.1} parent=1 // pred_check
      _
    $region23: #{tpu_custom_call.1} parent=1 // pred_check_branch
      %829 = sbr.rel (0) target = $region25
    $region24: #{tpu_custom_call.1} parent=1 // pred_region
      %s831 = ssub.s32 16, 16
      %832 = vsyncadd [#allocation4], %s831
      %s834 = sshll.u32 [#allocation7], 4
      %s835 = int_to_ptr.vmem [resolvable:$true] %s834
      %837 = dma.vmem_to_hbm [thread:$0]  %s835, 16, %s2, [#allocation4]
    $region25: #{tpu_custom_call.1} parent=1 // pred_fallthru
      _
    // Predicated region
    $region26: #{tpu_custom_call.1} parent=1 // pred_check
      _
    $region27: #{tpu_custom_call.1} parent=1 // pred_check_branch
      %839 = sbr.rel (0) target = $region29
    $region28: #{tpu_custom_call.1} parent=1 // pred_region
      %s841 = ssub.s32 16, 16
      %842 = vsyncadd [#allocation9], %s841
      %s844 = sshll.u32 [#allocation8], 4
      %s845 = int_to_ptr.vmem [resolvable:$true] %s844
      %847 = dma.vmem_to_hbm [thread:$0]  %s845, 16, %s3, [#allocation9]
    $region29: #{tpu_custom_call.1} parent=1 // pred_fallthru
      _
    // Predicated region
    $region30: #{tpu_custom_call.1} parent=1 // pred_check
      _
    $region31: #{tpu_custom_call.1} parent=1 // pred_check_branch
      %849 = sbr.rel (0) target = $region33
    $region32: #{tpu_custom_call.1} parent=1 // pred_region
      %s851 = ssub.s32 16, 16
      %852 = vsyncadd [#allocation9], %s851
      %s854 = sshll.u32 [#allocation10], 4
      %s855 = int_to_ptr.vmem [resolvable:$true] %s854
      %857 = dma.vmem_to_hbm [thread:$0]  %s855, 16, %s4, [#allocation9]
    $region33: #{tpu_custom_call.1} parent=1 // pred_fallthru
      _
    // Predicated region
    $region34: #{tpu_custom_call.1} parent=1 // pred_check
      _
    $region35: #{tpu_custom_call.1} parent=1 // pred_check_branch
      %859 = sbr.rel (0) target = $region37
    $region36: #{tpu_custom_call.1} parent=1 // pred_region
      %s861 = ssub.s32 16, 16
      %862 = vsyncadd [#allocation12], %s861
      %s864 = sshll.u32 [#allocation11], 4
      %s865 = int_to_ptr.vmem [resolvable:$true] %s864
      %867 = dma.vmem_to_hbm [thread:$0]  %s865, 16, %s5, [#allocation12]
    $region37: #{tpu_custom_call.1} parent=1 // pred_fallthru
      _
    // Predicated region
    $region38: #{tpu_custom_call.1} parent=1 // pred_check
      _
    $region39: #{tpu_custom_call.1} parent=1 // pred_check_branch
      %869 = sbr.rel (0) target = $region41
    $region40: #{tpu_custom_call.1} parent=1 // pred_region
      %870 = dma.done [#allocation4], 16
    $region41: #{tpu_custom_call.1} parent=1 // pred_fallthru
      _
    // Predicated region
    $region42: #{tpu_custom_call.1} parent=1 // pred_check
      _
    $region43: #{tpu_custom_call.1} parent=1 // pred_check_branch
      %872 = sbr.rel (0) target = $region45
    $region44: #{tpu_custom_call.1} parent=1 // pred_region
      %873 = dma.done [#allocation9], 16
    $region45: #{tpu_custom_call.1} parent=1 // pred_fallthru
      _
    // Predicated region
    $region46: #{tpu_custom_call.1} parent=1 // pred_check
      _
    $region47: #{tpu_custom_call.1} parent=1 // pred_check_branch
      %875 = sbr.rel (0) target = $region49
    $region48: #{tpu_custom_call.1} parent=1 // pred_region
      %876 = dma.done [#allocation9], 16
    $region49: #{tpu_custom_call.1} parent=1 // pred_fallthru
      _
    // Predicated region
    $region50: #{tpu_custom_call.1} parent=1 // pred_check
      _
    $region51: #{tpu_custom_call.1} parent=1 // pred_check_branch
      %878 = sbr.rel (0) target = $region53
    $region52: #{tpu_custom_call.1} parent=1 // pred_region
      %879 = dma.done [#allocation12], 16
    $region53: #{tpu_custom_call.1} parent=1 // pred_fallthru
      _
    %880 = vsyncpa [#allocation3], 1
    %881 = vsyncpa [#allocation6], 1
    %882 = vsyncpa [#allocation4], 1
    %883 = vsyncpa [#allocation9], 1
    %884 = vsyncpa [#allocation12], 1

</llo_original>
